<compile_context>
chip_gen: v7x
topology: tpu7x:2x2x1
jax: 0.10.0
libtpu: 0.0.40
codegen_flags: <defaults>
</compile_context>

<pallas_src>
import jax
import jax.numpy as jnp
from jax.experimental import pallas as pl
from jax.experimental.pallas import tpu as pltpu

# Conservative VMEM budget: fits v7x (64 MiB physical) with headroom, and is
# trivially fine on v5e/v6e (128 MiB).
_VMEM_BUDGET_BYTES = 48 << 20


def _mask_depth_kernel(zbuf_ref, mask_ref, depth_ref):
    # zbuf_ref : (TB, HW) f32 — TB batches, full flattened image on the lane axis
    # mask_ref : (TB, HW) f32
    # depth_ref: (TB, HW) f32
    zb = zbuf_ref[...]
    # Per-batch (per-row) reductions over the full z-buffer: lane-axis XLU work.
    zmin = jnp.min(zb, axis=-1, keepdims=True)            # (TB, 1)
    zmax = jnp.max(zb, axis=-1, keepdims=True)            # (TB, 1)
    # mask = (zbuf > -1).float()   — full-tile unmasked store
    mask_ref[...] = (zb > -1.0).astype(jnp.float32)
    # depth = (zbuf - zmin) / (zmax - zmin): one reciprocal per batch row
    # instead of one divide per pixel.  NOTE: zmax == zmin (all-background
    # frame) yields inf/nan, identical to the PyTorch reference behaviour.
    inv = 1.0 / (zmax - zmin)                              # (TB, 1)
    depth_ref[...] = (zb - zmin) * inv                     # full-tile unmasked store


def _pick_batch_tile(B, HW, vmem_budget_bytes=_VMEM_BUDGET_BYTES):
    """Batches per grid step: the biggest tile that fits the VMEM budget.

    Per batch row the pipeline keeps zbuf-in + mask/depth-out resident,
    double-buffered by BlockSpec: 3 * HW * 4 bytes * 2.
    """
    per_batch = 3 * HW * 4 * 2
    cap = max(1, vmem_budget_bytes // per_batch)
    if B <= cap:
        return B                                  # whole problem in one grid step
    # Otherwise: largest divisor of B that fits the budget, preferring a
    # multiple of 8 so the (TB, HW) block's sublane dim is (8,128)-aligned.
    divisors = [tb for tb in range(1, cap + 1) if B % tb == 0]
    mult8 = [tb for tb in divisors if tb % 8 == 0]
    return max(mult8) if mult8 else max(divisors)
    # TODO(synk): if a single batch's zbuf ever exceeds the budget (HW ~> 1M px
    # on v7x), switch to a (B, HW_tiles) grid with running min/max carried in
    # scratch (pl.when init at tile 0) or precompute zmin/zmax via scalar
    # prefetch; not needed at these sizes.


def mesh_renderer_with_depth(images_nhwc, zbuf_nhwk):
    """images_nhwc: [B,H,W,4] f32 shader output, zbuf_nhwk: [B,H,W,1] f32.

    Returns [B,H,W,5] = cat([rgb, mask, depth], -1), with depth min/max
    normalized per batch over the flattened z-buffer (faces_per_pixel == 1),
    matching the PyTorch forward semantics.
    """
    B, H, W, C = images_nhwc.shape
    assert C == 4 and zbuf_nhwk.shape == (B, H, W, 1)
    HW = H * W

    # Reshape-only glue (no transposes): zbuf is already lane-dense as [B, HW].
    zbuf_flat = zbuf_nhwk.reshape(B, HW)

    tb = _pick_batch_tile(B, HW)
    per_step_bytes = 3 * tb * HW * 4 * 2
    vmem_limit = int(min(_VMEM_BUDGET_BYTES, max(16 << 20, 4 * per_step_bytes)))

    mask_flat, depth_flat = pl.pallas_call(
        _mask_depth_kernel,
        out_shape=(jax.ShapeDtypeStruct((B, HW), jnp.float32),
                   jax.ShapeDtypeStruct((B, HW), jnp.float32)),
        grid_spec=pltpu.PrefetchScalarGridSpec(
            num_scalar_prefetch=0,
            grid=(B // tb,),
            in_specs=[pl.BlockSpec((tb, HW), lambda b: (b, 0))],
            out_specs=[pl.BlockSpec((tb, HW), lambda b: (b, 0)),
                       pl.BlockSpec((tb, HW), lambda b: (b, 0))],
        ),
        compiler_params=pltpu.CompilerParams(
            dimension_semantics=("parallel",),
            vmem_limit_bytes=vmem_limit,
        ),
    )(zbuf_flat)

    # Final channel assembly left to XLA: pure reshape + concat, no transpose;
    # the RGB channels never round-trip through the kernel.
    mask = mask_flat.reshape(B, H, W, 1)
    depth = depth_flat.reshape(B, H, W, 1)
    return jnp.concatenate([images_nhwc[..., :3], mask, depth], axis=-1)


# ----------------------------------------------------------------------------
# Synthetic stand-ins for the rasterizer / shader (deterministic, in-script).
# TODO(synk): full differentiable mesh rasterization + shading (neural_renderer
# / PyTorch3D) has no clean Pallas equivalent; fragments.zbuf and shader images
# are synthesized here.
# ----------------------------------------------------------------------------
def synthetic_rasterizer_and_shader(key, B, H, W):
    k_img, k_z, k_bg = jax.random.split(key, 3)
    # shader output: RGBA in [0, 1]
    images = jax.random.uniform(k_img, (B, H, W, 4), dtype=jnp.float32)
    # zbuf: positive depths for covered pixels, exactly -1 for background
    depths = jax.random.uniform(k_z, (B, H, W, 1), dtype=jnp.float32,
                                minval=0.5, maxval=3.0)
    covered = jax.random.uniform(k_bg, (B, H, W, 1)) > 0.3
    zbuf = jnp.where(covered, depths, jnp.float32(-1.0))
    return images, zbuf


def _reference(images, zbuf):
    # Pure-JAX transcription of the PyTorch forward for validation.
    mask = (zbuf > -1).astype(jnp.float32)
    B = images.shape[0]
    zb = zbuf.reshape(B, -1)
    zmin = zb.min(-1, keepdims=True)
    zmax = zb.max(-1, keepdims=True)
    depth = ((zb - zmin) / (zmax - zmin)).reshape(images.shape[:3] + (1,))
    return jnp.concatenate([images[..., :3], mask, depth], axis=-1)


if __name__ == "__main__":
    key = jax.random.PRNGKey(0)
    B, H, W = 2, 16, 16
    images, zbuf = synthetic_rasterizer_and_shader(key, B, H, W)

    out = mesh_renderer_with_depth(images, zbuf)
    out = jax.block_until_ready(out)

    ref = _reference(images, zbuf)
    assert out.shape == (B, H, W, 5), out.shape
    assert jnp.allclose(out, ref, atol=1e-6, rtol=1e-6)
    print("KERNEL_OK")
</pallas_src>

<mosaic_0001>
module attributes {stable_mosaic.version = 11 : i64} {
  func.func @_mask_depth_kernel(%arg0: i32, %arg1: memref<2x256xf32, #tpu.memory_space<vmem>>, %arg2: memref<2x256xf32, #tpu.memory_space<vmem>>, %arg3: memref<2x256xf32, #tpu.memory_space<vmem>>) attributes {dimension_semantics = [#tpu.dimension_semantics<parallel>], iteration_bounds = array<i64: 1>, scalar_prefetch = 0 : i64, scratch_operands = 0 : i64, tpu.core_type = #tpu.core_type<tc>, window_params = [{transform_indices = @transform_0, window_bounds = array<i64: 2, 256>}, {transform_indices = @transform_1, window_bounds = array<i64: 2, 256>}, {transform_indices = @transform_2, window_bounds = array<i64: 2, 256>}]} {
    %c0 = arith.constant 0 : index
    %c0_0 = arith.constant 0 : index
    %0 = vector.load %arg1[%c0, %c0_0] : memref<2x256xf32, #tpu.memory_space<vmem>>, vector<2x256xf32>
    %cst = arith.constant dense<0x7F800000> : vector<2xf32>
    %1 = vector.multi_reduction <minimumf>, %0, %cst [1] : vector<2x256xf32> to vector<2xf32>
    %2 = vector.shape_cast %1 : vector<2xf32> to vector<2x1xf32>
    %cst_1 = arith.constant dense<0xFF800000> : vector<2xf32>
    %3 = vector.multi_reduction <maximumf>, %0, %cst_1 [1] : vector<2x256xf32> to vector<2xf32>
    %4 = vector.shape_cast %3 : vector<2xf32> to vector<2x1xf32>
    %cst_2 = arith.constant -1.000000e+00 : f32
    %5 = vector.broadcast %cst_2 : f32 to vector<2x256xf32>
    %6 = arith.cmpf ogt, %0, %5 : vector<2x256xf32>
    %7 = arith.extui %6 : vector<2x256xi1> to vector<2x256xi32>
    %8 = arith.sitofp %7 : vector<2x256xi32> to vector<2x256xf32>
    %c0_3 = arith.constant 0 : index
    %c0_4 = arith.constant 0 : index
    %9 = vector.load %arg2[%c0_3, %c0_4] : memref<2x256xf32, #tpu.memory_space<vmem>>, vector<2x256xf32>
    tpu.vector_store %arg2[%c0_3, %c0_4], %8 {strides = array<i32>} : memref<2x256xf32, #tpu.memory_space<vmem>>, vector<2x256xf32>,
    %10 = arith.subf %4, %2 : vector<2x1xf32>
    %cst_5 = arith.constant 1.000000e+00 : f32
    %11 = vector.broadcast %cst_5 : f32 to vector<2x1xf32>
    %12 = arith.divf %11, %10 : vector<2x1xf32>
    %13 = vector.broadcast %2 : vector<2x1xf32> to vector<2x256xf32>
    %14 = arith.subf %0, %13 : vector<2x256xf32>
    %15 = vector.broadcast %12 : vector<2x1xf32> to vector<2x256xf32>
    %16 = arith.mulf %14, %15 : vector<2x256xf32>
    %c0_6 = arith.constant 0 : index
    %c0_7 = arith.constant 0 : index
    %17 = vector.load %arg3[%c0_6, %c0_7] : memref<2x256xf32, #tpu.memory_space<vmem>>, vector<2x256xf32>
    tpu.vector_store %arg3[%c0_6, %c0_7], %16 {strides = array<i32>} : memref<2x256xf32, #tpu.memory_space<vmem>>, vector<2x256xf32>,
    return
  }
  func.func @transform_0(%arg0: i32) -> (i32, i32) {
    %c0_i32 = arith.constant 0 : i32
    %c0_i32_0 = arith.constant 0 : i32
    return %arg0, %c0_i32 : i32, i32
  }
  func.func @transform_1(%arg0: i32) -> (i32, i32) {
    %c0_i32 = arith.constant 0 : i32
    %c0_i32_0 = arith.constant 0 : i32
    return %arg0, %c0_i32 : i32, i32
  }
  func.func @transform_2(%arg0: i32) -> (i32, i32) {
    %c0_i32 = arith.constant 0 : i32
    %c0_i32_0 = arith.constant 0 : i32
    return %arg0, %c0_i32 : i32, i32
  }
}

</mosaic_0001>

<llo_original>
// kernel: tpu_custom_call.1
$region0: #{tpu_custom_call.1}
  #allocation0 [shape = 'u32[]', space=smem, size = 0x4, offset = 0x4, fixed_abs, tag = 'smem constant byte address 0x4 - core index']
  #allocation1 [shape = 'u32[144,128]{1,0:T(1,128)}', space=vmem, size = 0x12000, scoped, tag = 'internal scratch']
  %s0 = inlined_call_operand.hbm [shape: f32[2,256], index: 0, kind: input, shape index: {}]
  %s1 = inlined_call_operand.hbm [shape: f32[2,256], index: 1, kind: output, shape index: {0}]
  %s2 = inlined_call_operand.hbm [shape: f32[2,256], index: 2, kind: output, shape index: {1}]
  %3 = xla_tuple %s1, %s2
  %s4 = sld [smem:[#allocation0]]
  $region26: #{tpu_custom_call.1} parent=0
    _
  %s6 = ssub.s32 1, %s4
  %s7 = scalar_select 0, %s6, %s4
  $region1: #{tpu_custom_call.1} parent=0
    #allocation2 [shape = 'u8[2048]{0}', space=vmem, size = 0x800, scoped, tag = 'input window, operand 0, single buffered']
    #allocation3 [shape = 's32[1]{0}', space=sflag, size = 0x4, scoped, tag = 'scoped memory for tpu_custom_call.1']
    #allocation4 [shape = 's32[1]{0}', space=sflag, size = 0x4, scoped, tag = 'scoped memory for tpu_custom_call.1']
    #allocation5 [shape = 'u8[2048]{0}', space=vmem, size = 0x800, scoped, tag = 'output window, operand 0, single buffered']
    #allocation6 [shape = 'u8[2048]{0}', space=vmem, size = 0x800, scoped, tag = 'output window, operand 1, single buffered']
    #allocation7 [shape = 's32[1]{0}', space=sflag, size = 0x4, scoped, tag = 'scoped memory for tpu_custom_call.1']
    %8 = vsyncpa [#allocation3], 0
    %9 = vsyncpa [#allocation4], 0
    %10 = vsyncpa [#allocation7], 0
    // Predicated region
    $region2: #{tpu_custom_call.1} parent=1 // pred_check
      _
    $region3: #{tpu_custom_call.1} parent=1 // pred_check_branch
      %12 = sbr.rel (0) target = $region5
    $region4: #{tpu_custom_call.1} parent=1 // pred_region
      %s14 = ssub.s32 64, 64
      %15 = vsyncadd [#allocation3], %s14
      %s17 = sshll.u32 [#allocation2], 4
      %s18 = int_to_ptr.vmem [resolvable:$true] %s17
      %20 = dma.hbm_to_vmem [thread:$0]  %s0, 64, %s18, [#allocation3]
    $region5: #{tpu_custom_call.1} parent=1 // pred_fallthru
      _
    // Predicated region
    $region6: #{tpu_custom_call.1} parent=1 // pred_check
      _
    $region7: #{tpu_custom_call.1} parent=1 // pred_check_branch
      %22 = sbr.rel (0) target = $region9
    $region8: #{tpu_custom_call.1} parent=1 // pred_region
      %23 = dma.done [#allocation3], 64
    $region9: #{tpu_custom_call.1} parent=1 // pred_fallthru
      _
    %v24 = vld [vmem:[#allocation2] sm:$0xf]
    %v27 = vunpack.c.l.s4 1983009808
    %v28 = vunpack.c.0.s8 %v27
    %v29 = vlaneseq
    %v30 = vshrl.u32 %v29, 7
    %v31 = vsub.s32 %v28, %v30
    %v32 = vrot.slane %v24, %v31
    %v33 = vcombine.high %v32, %v32
    %vm36 = vcmask 1041408
    %v37 = vsel %vm36, %v32, inf
    %v38 = vsel %vm36, %v33, inf
    %v39 = vmin.f32 %v37, %v38
    %40 = vmin.xlane.f32.xlu0 %v39
    %v41 = vpop.xlane.xlu0 %40
    %v42 = vsel %vm36, %v32, -inf
    %v43 = vsel %vm36, %v33, -inf
    %v44 = vmax.f32 %v42, %v43
    %45 = vmax.xlane.f32.xlu0 %v44
    %v46 = vpop.xlane.xlu0 %45
    %vm47 = vcmp.gt.f32.partialorder %v24, -1.0
    %v48 = vsel %vm47, 1, 0
    %v49 = vcvt.s32.f32 %v48
    %50 = vst [vmem:[#allocation5] sm:$0xf] %v49
    %v51 = vsub.f32 %v46, %v41
    %v52 = vrcp.pop %v51
    %v53 = vmul.f32 1.0, %v52
    %v56 = vunpack.c.l.s4 269488144
    %v57 = vunpack.c.0.s8 %v56
    %v58 = vlaneseq
    %v59 = vshrl.u32 %v58, 7
    %v60 = vsub.s32 %v57, %v59
    %v61 = vrot.slane %v41, %v60
    %v63 = vsub.f32 %v24, %v61
    %v66 = vunpack.c.l.s4 269488144
    %v67 = vunpack.c.0.s8 %v66
    %v68 = vlaneseq
    %v69 = vshrl.u32 %v68, 7
    %v70 = vsub.s32 %v67, %v69
    %v71 = vrot.slane %v53, %v70
    %v73 = vmul.f32 %v63, %v71
    %74 = vst [vmem:[#allocation6] sm:$0xf] %v73
    // Predicated region
    $region10: #{tpu_custom_call.1} parent=1 // pred_check
      _
    $region11: #{tpu_custom_call.1} parent=1 // pred_check_branch
      %76 = sbr.rel (0) target = $region13
    $region12: #{tpu_custom_call.1} parent=1 // pred_region
      %s78 = ssub.s32 64, 64
      %79 = vsyncadd [#allocation4], %s78
      %s81 = sshll.u32 [#allocation5], 4
      %s82 = int_to_ptr.vmem [resolvable:$true] %s81
      %84 = dma.vmem_to_hbm [thread:$0]  %s82, 64, %s1, [#allocation4]
    $region13: #{tpu_custom_call.1} parent=1 // pred_fallthru
      _
    // Predicated region
    $region14: #{tpu_custom_call.1} parent=1 // pred_check
      _
    $region15: #{tpu_custom_call.1} parent=1 // pred_check_branch
      %86 = sbr.rel (0) target = $region17
    $region16: #{tpu_custom_call.1} parent=1 // pred_region
      %s88 = ssub.s32 64, 64
      %89 = vsyncadd [#allocation7], %s88
      %s91 = sshll.u32 [#allocation6], 4
      %s92 = int_to_ptr.vmem [resolvable:$true] %s91
      %94 = dma.vmem_to_hbm [thread:$0]  %s92, 64, %s2, [#allocation7]
    $region17: #{tpu_custom_call.1} parent=1 // pred_fallthru
      _
    // Predicated region
    $region18: #{tpu_custom_call.1} parent=1 // pred_check
      _
    $region19: #{tpu_custom_call.1} parent=1 // pred_check_branch
      %96 = sbr.rel (0) target = $region21
    $region20: #{tpu_custom_call.1} parent=1 // pred_region
      %97 = dma.done [#allocation4], 64
    $region21: #{tpu_custom_call.1} parent=1 // pred_fallthru
      _
    // Predicated region
    $region22: #{tpu_custom_call.1} parent=1 // pred_check
      _
    $region23: #{tpu_custom_call.1} parent=1 // pred_check_branch
      %99 = sbr.rel (0) target = $region25
    $region24: #{tpu_custom_call.1} parent=1 // pred_region
      %100 = dma.done [#allocation7], 64
    $region25: #{tpu_custom_call.1} parent=1 // pred_fallthru
      _
    %101 = vsyncpa [#allocation3], 1
    %102 = vsyncpa [#allocation4], 1
    %103 = vsyncpa [#allocation7], 1

</llo_original>
